<compile_context>
chip_gen: v5e
topology: v5e:2x2
jax: 0.10.0
libtpu: 0.0.40
codegen_flags: <defaults>
</compile_context>

<pallas_src>
import functools

import jax
import jax.numpy as jnp
from jax.experimental import pallas as pl
from jax.experimental.pallas import tpu as pltpu

LANE = 128


def _round_up(n: int, m: int) -> int:
    return ((n + m - 1) // m) * m


def _cdiv(a: int, b: int) -> int:
    return -(-a // b)


def pick_elementwise_dtype_name() -> str:
    """bf16 elementwise on v6e/v7x (bf16 VPU/EUP); f32 on v5e and older/unknown."""
    try:
        kind = jax.devices()[0].device_kind.lower()
    except Exception:
        kind = ""
    return "bfloat16" if ("v6" in kind or "v7" in kind) else "float32"


def _vmem_capacity_bytes() -> int:
    try:
        return int(pltpu.get_tpu_info().vmem_capacity_bytes)
    except Exception:
        return 64 << 20  # conservative fallback (v7x per-TC capacity)


# ----------------------------------------------------------------------------
# Kernel
# ----------------------------------------------------------------------------
def _mlp_kernel(x_ref, w_in_ref, b_in_ref, w_mid_ref, b_mid_ref,
                w_out_ref, b_out_ref, o_ref, *,
                num_middle: int, compute_dtype, act_dtype):
    """One batch tile: x(TILE_B, in_dim) f32 -> out(TILE_B, 1) f32.

    Weights/biases are VMEM-resident (constant index_maps, single-buffered).
    MXU inputs are compute_dtype (bf16) with f32 accumulation; bias add / tanh /
    inter-layer activations run in act_dtype (bf16 on v6e/v7x, f32 on v5e).
    """
    # Input layer: cast the f32 x tile to bf16 in-register; K=10 is padded by Mosaic.
    x = x_ref[...].astype(compute_dtype)
    acc = jnp.dot(x, w_in_ref[...], preferred_element_type=jnp.float32)
    h = jnp.tanh(acc.astype(act_dtype) + b_in_ref[...])

    # Middle layers: static unroll (num_middle is a small compile-time constant).
    # For very deep nets switch to lax.fori_loop to bound live ranges.
    for layer in range(num_middle):
        acc = jnp.dot(h.astype(compute_dtype), w_mid_ref[layer],
                      preferred_element_type=jnp.float32)
        h = jnp.tanh(acc.astype(act_dtype) + b_mid_ref[layer])

    # Output layer (H -> 1): VPU multiply + lane (XLU) reduction instead of an
    # N=1 MXU pass.  Output bytes are tiny, so the width-1 store is fine.
    out = jnp.sum(h.astype(jnp.float32) * w_out_ref[...], axis=-1, keepdims=True)
    o_ref[...] = (out + b_out_ref[...]).astype(o_ref.dtype)


# ----------------------------------------------------------------------------
# Parameter preparation (one-time pad + cast; result is the canonical param set)
# ----------------------------------------------------------------------------
def prepare_params(params, *, compute_dtype=jnp.bfloat16, act_dtype="float32"):
    """Pad H to a lane multiple and cast once.  Returns (prepared_tuple, num_middle)."""
    w_in, b_in, w_mid, b_mid, w_out, b_out = params
    in_dim, H = w_in.shape
    num_middle = int(w_mid.shape[0])
    h_pad = _round_up(H, LANE)
    n_mid_p = max(num_middle, 1)          # never hand Mosaic a 0-sized array
    cd = jnp.dtype(compute_dtype)
    ad = jnp.dtype(act_dtype)

    w_in_p = jnp.zeros((in_dim, h_pad), cd).at[:, :H].set(w_in.astype(cd))
    b_in_p = jnp.zeros((1, h_pad), ad).at[:, :H].set(b_in.reshape(1, -1).astype(ad))
    w_mid_p = jnp.zeros((n_mid_p, h_pad, h_pad), cd).at[:num_middle, :H, :H].set(
        w_mid.astype(cd))
    b_mid_p = jnp.zeros((n_mid_p, 1, h_pad), ad).at[:num_middle, :, :H].set(
        b_mid.reshape(num_middle, 1, H).astype(ad))
    w_out_row = jnp.zeros((1, h_pad), jnp.float32).at[:, :H].set(
        w_out.reshape(-1).astype(jnp.float32))
    b_out_p = jnp.asarray(b_out, jnp.float32).reshape(1, 1)

    prepared = (w_in_p, b_in_p, w_mid_p, b_mid_p, w_out_row, b_out_p)
    return prepared, num_middle


# ----------------------------------------------------------------------------
# Batch tiling
# ----------------------------------------------------------------------------
def _choose_batch_tiling(B, in_dim, h_pad, act_itemsize, tile_target):
    # Keep the per-tile activation slabs modest while amortizing the ~0.35us/step
    # overhead; guarantee >= 2 grid steps when possible so v7x's two TCs both work.
    per_row = 3 * h_pad * max(act_itemsize, 2) + in_dim * 4 + 8
    cap = max(64, (8 << 20) // per_row)
    target = max(64, min(tile_target, cap))
    n_tiles = max(1, _cdiv(B, target))
    if B >= 16:
        n_tiles = max(n_tiles, 2)
    tile_b = max(8, _round_up(_cdiv(B, n_tiles), 8))
    b_pad = n_tiles * tile_b
    return tile_b, b_pad, n_tiles


# ----------------------------------------------------------------------------
# Forward
# ----------------------------------------------------------------------------
@functools.partial(jax.jit, static_argnames=("num_middle", "compute_dtype_name",
                                              "act_dtype_name", "tile_target"))
def _forward(x, w_in_p, b_in_p, w_mid_p, b_mid_p, w_out_row, b_out_p, *,
             num_middle, compute_dtype_name, act_dtype_name, tile_target):
    cd = jnp.dtype(compute_dtype_name)
    ad = jnp.dtype(act_dtype_name)
    B, in_dim = x.shape
    h_pad = w_in_p.shape[1]
    n_mid_p = w_mid_p.shape[0]

    tile_b, b_pad, n_tiles = _choose_batch_tiling(B, in_dim, h_pad, ad.itemsize,
                                                  tile_target)
    x_b = x if b_pad == B else jnp.pad(x, ((0, b_pad - B), (0, 0)))

    # ---- VMEM budget: single-buffered resident weights + double-buffered x/out ----
    weight_bytes = (w_in_p.size * cd.itemsize + w_mid_p.size * cd.itemsize
                    + b_in_p.size * ad.itemsize + b_mid_p.size * ad.itemsize
                    + (w_out_row.size + b_out_p.size) * 4)
    stream_bytes = 2 * (tile_b * in_dim * x.dtype.itemsize + tile_b * 4)
    act_bytes = 4 * tile_b * h_pad * max(ad.itemsize, 2)
    vmem_needed = weight_bytes + stream_bytes + act_bytes
    vmem_cap = _vmem_capacity_bytes()
    usable = max(vmem_cap - (12 << 20), 16 << 20)
    vmem_limit = int(min(max(vmem_needed + (4 << 20), 32 << 20), usable))

    # ---- cost estimate in logical (unpadded batch / real in_dim) terms ----
    flops = 2 * B * (in_dim * h_pad + num_middle * h_pad * h_pad + h_pad)
    transcendentals = B * h_pad * (1 + num_middle)
    bytes_accessed = B * in_dim * x.dtype.itemsize + weight_bytes + B * 4

    kernel = functools.partial(_mlp_kernel, num_middle=num_middle,
                               compute_dtype=cd, act_dtype=ad)
    resident = pl.Buffered(1)   # constant index_maps -> no double-buffering needed

    out = pl.pallas_call(
        kernel,
        out_shape=jax.ShapeDtypeStruct((b_pad, 1), jnp.float32),
        grid=(n_tiles,),
        in_specs=[
            # x streamed at its real feature width (last dim == full array dim).
            pl.BlockSpec((tile_b, in_dim), lambda i: (i, 0)),
            pl.BlockSpec((in_dim, h_pad), lambda i: (0, 0), pipeline_mode=resident),
            pl.BlockSpec((1, h_pad), lambda i: (0, 0), pipeline_mode=resident),
            pl.BlockSpec((n_mid_p, h_pad, h_pad), lambda i: (0, 0, 0),
                         pipeline_mode=resident),
            pl.BlockSpec((n_mid_p, 1, h_pad), lambda i: (0, 0, 0),
                         pipeline_mode=resident),
            pl.BlockSpec((1, h_pad), lambda i: (0, 0), pipeline_mode=resident),
            pl.BlockSpec((1, 1), lambda i: (0, 0), pipeline_mode=resident),
        ],
        out_specs=pl.BlockSpec((tile_b, 1), lambda i: (i, 0)),
        compiler_params=pltpu.CompilerParams(
            dimension_semantics=("parallel",),
            vmem_limit_bytes=vmem_limit,
        ),
        cost_estimate=pl.CostEstimate(
            flops=flops,
            transcendentals=transcendentals,
            bytes_accessed=bytes_accessed,
        ),
    )(x_b, w_in_p, b_in_p, w_mid_p, b_mid_p, w_out_row, b_out_p)

    return out[:B]


def nn_approximator_forward(x, prepared_params, *, num_middle,
                            compute_dtype=jnp.bfloat16, act_dtype=None,
                            tile_target=1024):
    """x: (B, 10) float32, prepared_params from prepare_params() -> (B, 1) float32."""
    if act_dtype is None:
        act_dtype = pick_elementwise_dtype_name()
    return _forward(x, *prepared_params,
                    num_middle=num_middle,
                    compute_dtype_name=jnp.dtype(compute_dtype).name,
                    act_dtype_name=jnp.dtype(act_dtype).name,
                    tile_target=tile_target)


# ----------------------------------------------------------------------------
# Synthetic params + pure-JAX reference
# ----------------------------------------------------------------------------
def init_params(key, num_hidden, dim_hidden, in_dim=10, out_dim=1):
    """Deterministic synthetic parameters matching the PyTorch module's shapes.

    Weights stored as (in_features, out_features) so each layer is x @ W + b
    (equivalent to PyTorch x @ W.T + b with W of shape (out, in)).
    """
    num_middle = num_hidden - 1
    keys = jax.random.split(key, 6)
    scale_in = 1.0 / jnp.sqrt(in_dim)
    scale_h = 1.0 / jnp.sqrt(dim_hidden)
    w_in = jax.random.uniform(keys[0], (in_dim, dim_hidden), jnp.float32,
                              -scale_in, scale_in)
    b_in = jax.random.uniform(keys[1], (1, dim_hidden), jnp.float32,
                              -scale_in, scale_in)
    w_mid = jax.random.uniform(keys[2], (num_middle, dim_hidden, dim_hidden),
                               jnp.float32, -scale_h, scale_h)
    b_mid = jax.random.uniform(keys[3], (num_middle, 1, dim_hidden),
                               jnp.float32, -scale_h, scale_h)
    w_out = jax.random.uniform(keys[4], (dim_hidden, out_dim), jnp.float32,
                               -scale_h, scale_h)
    b_out = jax.random.uniform(keys[5], (1, out_dim), jnp.float32,
                               -scale_h, scale_h)
    return w_in, b_in, w_mid, b_mid, w_out, b_out


def reference_forward(x, params, compute_dtype=jnp.bfloat16, act_dtype="float32"):
    """Pure-JAX reference mirroring the kernel numerics (bf16 MXU, f32 acc)."""
    w_in, b_in, w_mid, b_mid, w_out, b_out = params
    cd = jnp.dtype(compute_dtype)
    ad = jnp.dtype(act_dtype)
    acc = jnp.dot(x.astype(cd), w_in.astype(cd), preferred_element_type=jnp.float32)
    h = jnp.tanh(acc.astype(ad) + b_in.astype(ad))
    for i in range(w_mid.shape[0]):
        acc = jnp.dot(h.astype(cd), w_mid[i].astype(cd),
                      preferred_element_type=jnp.float32)
        h = jnp.tanh(acc.astype(ad) + b_mid[i].astype(ad))
    return jnp.dot(h.astype(jnp.float32), w_out.astype(jnp.float32),
                   preferred_element_type=jnp.float32) + b_out


if __name__ == "__main__":
    num_hidden = 3     # -> 2 middle layers (num_hidden - 1)
    dim_hidden = 32
    batch = 8

    key = jax.random.PRNGKey(0)
    k_x, k_p = jax.random.split(key)
    # The PyTorch script feeds linspace(0,1,10) points; here a small batch of
    # 10-dim inputs (each row plays the role of the 10-point domain vector).
    x = jax.random.uniform(k_x, (batch, 10), jnp.float32)

    params = init_params(k_p, num_hidden, dim_hidden)

    act_name = pick_elementwise_dtype_name()        # bf16 on v6e/v7x, f32 on v5e
    prepared, num_middle = prepare_params(params, compute_dtype=jnp.bfloat16,
                                          act_dtype=act_name)

    out = nn_approximator_forward(x, prepared, num_middle=num_middle,
                                  compute_dtype=jnp.bfloat16, act_dtype=act_name)
    out = jax.block_until_ready(out)

    ref = reference_forward(x, params, compute_dtype=jnp.bfloat16,
                            act_dtype=act_name)
    assert out.shape == (batch, 1), out.shape
    err = float(jnp.max(jnp.abs(out - ref)))
    assert err < 1e-2, f"max abs err {err}"

    print("KERNEL_OK")
</pallas_src>

<mosaic_0001>
module attributes {stable_mosaic.version = 11 : i64} {
  func.func @_mlp_kernel(%arg0: i32, %arg1: memref<8x10xf32, #tpu.memory_space<vmem>>, %arg2: memref<10x128xbf16, #tpu.memory_space<vmem>>, %arg3: memref<1x128xf32, #tpu.memory_space<vmem>>, %arg4: memref<2x128x128xbf16, #tpu.memory_space<vmem>>, %arg5: memref<2x1x128xf32, #tpu.memory_space<vmem>>, %arg6: memref<1x128xf32, #tpu.memory_space<vmem>>, %arg7: memref<1x1xf32, #tpu.memory_space<vmem>>, %arg8: memref<8x1xf32, #tpu.memory_space<vmem>>) attributes {dimension_semantics = [#tpu.dimension_semantics<parallel>], iteration_bounds = array<i64: 1>, scalar_prefetch = 0 : i64, scratch_operands = 0 : i64, tpu.core_type = #tpu.core_type<tc>, window_params = [{transform_indices = @transform_0, window_bounds = array<i64: 8, 10>}, {pipeline_mode = #tpu.pipeline_mode<synchronous>, transform_indices = @transform_1, window_bounds = array<i64: 10, 128>}, {pipeline_mode = #tpu.pipeline_mode<synchronous>, transform_indices = @transform_2, window_bounds = array<i64: 1, 128>}, {pipeline_mode = #tpu.pipeline_mode<synchronous>, transform_indices = @transform_3, window_bounds = array<i64: 2, 128, 128>}, {pipeline_mode = #tpu.pipeline_mode<synchronous>, transform_indices = @transform_4, window_bounds = array<i64: 2, 1, 128>}, {pipeline_mode = #tpu.pipeline_mode<synchronous>, transform_indices = @transform_5, window_bounds = array<i64: 1, 128>}, {pipeline_mode = #tpu.pipeline_mode<synchronous>, transform_indices = @transform_6, window_bounds = array<i64: 1, 1>}, {transform_indices = @transform_7, window_bounds = array<i64: 8, 1>}]} {
    %c0 = arith.constant 0 : index
    %c0_0 = arith.constant 0 : index
    %0 = vector.load %arg1[%c0, %c0_0] : memref<8x10xf32, #tpu.memory_space<vmem>>, vector<8x10xf32>
    %1 = arith.truncf %0 : vector<8x10xf32> to vector<8x10xbf16>
    %c0_1 = arith.constant 0 : index
    %c0_2 = arith.constant 0 : index
    %2 = vector.load %arg2[%c0_1, %c0_2] : memref<10x128xbf16, #tpu.memory_space<vmem>>, vector<10x128xbf16>
    %cst = arith.constant dense<0.000000e+00> : vector<8x128xf32>
    %3 = tpu.matmul %1, %2, %cst {dimension_numbers = #tpu.dot_dimension_numbers<[1], [0], [0], [1], [0, 0, 1, 1], [], []>} : vector<8x10xbf16>, vector<10x128xbf16>, vector<8x128xf32> -> vector<8x128xf32>
    %c0_3 = arith.constant 0 : index
    %c0_4 = arith.constant 0 : index
    %4 = vector.load %arg3[%c0_3, %c0_4] : memref<1x128xf32, #tpu.memory_space<vmem>>, vector<1x128xf32>
    %5 = vector.broadcast %4 : vector<1x128xf32> to vector<8x128xf32>
    %6 = arith.addf %3, %5 : vector<8x128xf32>
    %7 = math.tanh %6 : vector<8x128xf32>
    %8 = arith.truncf %7 : vector<8x128xf32> to vector<8x128xbf16>
    %c0_5 = arith.constant 0 : index
    %c0_6 = arith.constant 0 : index
    %c0_7 = arith.constant 0 : index
    %9 = vector.load %arg4[%c0_5, %c0_6, %c0_7] : memref<2x128x128xbf16, #tpu.memory_space<vmem>>, vector<1x128x128xbf16>
    %10 = vector.shape_cast %9 : vector<1x128x128xbf16> to vector<128x128xbf16>
    %cst_8 = arith.constant dense<0.000000e+00> : vector<8x128xf32>
    %11 = tpu.matmul %8, %10, %cst_8 {dimension_numbers = #tpu.dot_dimension_numbers<[1], [0], [0], [1], [0, 0, 1, 1], [], []>} : vector<8x128xbf16>, vector<128x128xbf16>, vector<8x128xf32> -> vector<8x128xf32>
    %c0_9 = arith.constant 0 : index
    %c0_10 = arith.constant 0 : index
    %c0_11 = arith.constant 0 : index
    %12 = vector.load %arg5[%c0_9, %c0_10, %c0_11] : memref<2x1x128xf32, #tpu.memory_space<vmem>>, vector<1x1x128xf32>
    %13 = vector.shape_cast %12 : vector<1x1x128xf32> to vector<1x128xf32>
    %14 = vector.broadcast %13 : vector<1x128xf32> to vector<8x128xf32>
    %15 = arith.addf %11, %14 : vector<8x128xf32>
    %16 = math.tanh %15 : vector<8x128xf32>
    %17 = arith.truncf %16 : vector<8x128xf32> to vector<8x128xbf16>
    %c1 = arith.constant 1 : index
    %c0_12 = arith.constant 0 : index
    %c0_13 = arith.constant 0 : index
    %18 = vector.load %arg4[%c1, %c0_12, %c0_13] : memref<2x128x128xbf16, #tpu.memory_space<vmem>>, vector<1x128x128xbf16>
    %19 = vector.shape_cast %18 : vector<1x128x128xbf16> to vector<128x128xbf16>
    %cst_14 = arith.constant dense<0.000000e+00> : vector<8x128xf32>
    %20 = tpu.matmul %17, %19, %cst_14 {dimension_numbers = #tpu.dot_dimension_numbers<[1], [0], [0], [1], [0, 0, 1, 1], [], []>} : vector<8x128xbf16>, vector<128x128xbf16>, vector<8x128xf32> -> vector<8x128xf32>
    %c1_15 = arith.constant 1 : index
    %c0_16 = arith.constant 0 : index
    %c0_17 = arith.constant 0 : index
    %21 = vector.load %arg5[%c1_15, %c0_16, %c0_17] : memref<2x1x128xf32, #tpu.memory_space<vmem>>, vector<1x1x128xf32>
    %22 = vector.shape_cast %21 : vector<1x1x128xf32> to vector<1x128xf32>
    %23 = vector.broadcast %22 : vector<1x128xf32> to vector<8x128xf32>
    %24 = arith.addf %20, %23 : vector<8x128xf32>
    %25 = math.tanh %24 : vector<8x128xf32>
    %c0_18 = arith.constant 0 : index
    %c0_19 = arith.constant 0 : index
    %26 = vector.load %arg6[%c0_18, %c0_19] : memref<1x128xf32, #tpu.memory_space<vmem>>, vector<1x128xf32>
    %27 = vector.broadcast %26 : vector<1x128xf32> to vector<8x128xf32>
    %28 = arith.mulf %25, %27 : vector<8x128xf32>
    %cst_20 = arith.constant dense<0.000000e+00> : vector<8xf32>
    %29 = vector.multi_reduction <add>, %28, %cst_20 [1] : vector<8x128xf32> to vector<8xf32>
    %30 = vector.shape_cast %29 : vector<8xf32> to vector<8x1xf32>
    %c0_21 = arith.constant 0 : index
    %c0_22 = arith.constant 0 : index
    %31 = vector.load %arg7[%c0_21, %c0_22] : memref<1x1xf32, #tpu.memory_space<vmem>>, vector<1x1xf32>
    %32 = vector.broadcast %31 : vector<1x1xf32> to vector<8x1xf32>
    %33 = arith.addf %30, %32 : vector<8x1xf32>
    %c0_23 = arith.constant 0 : index
    %c0_24 = arith.constant 0 : index
    %34 = vector.load %arg8[%c0_23, %c0_24] : memref<8x1xf32, #tpu.memory_space<vmem>>, vector<8x1xf32>
    tpu.vector_store %arg8[%c0_23, %c0_24], %33 {strides = array<i32>} : memref<8x1xf32, #tpu.memory_space<vmem>>, vector<8x1xf32>,
    return
  }
  func.func @transform_0(%arg0: i32) -> (i32, i32) {
    %c0_i32 = arith.constant 0 : i32
    %c0_i32_0 = arith.constant 0 : i32
    return %arg0, %c0_i32 : i32, i32
  }
  func.func @transform_1(%arg0: i32) -> (i32, i32) {
    %c0_i32 = arith.constant 0 : i32
    %c0_i32_0 = arith.constant 0 : i32
    %c0_i32_1 = arith.constant 0 : i32
    return %c0_i32, %c0_i32_0 : i32, i32
  }
  func.func @transform_2(%arg0: i32) -> (i32, i32) {
    %c0_i32 = arith.constant 0 : i32
    %c0_i32_0 = arith.constant 0 : i32
    %c0_i32_1 = arith.constant 0 : i32
    return %c0_i32, %c0_i32_0 : i32, i32
  }
  func.func @transform_3(%arg0: i32) -> (i32, i32, i32) {
    %c0_i32 = arith.constant 0 : i32
    %c0_i32_0 = arith.constant 0 : i32
    %c0_i32_1 = arith.constant 0 : i32
    %c0_i32_2 = arith.constant 0 : i32
    return %c0_i32, %c0_i32_0, %c0_i32_1 : i32, i32, i32
  }
  func.func @transform_4(%arg0: i32) -> (i32, i32, i32) {
    %c0_i32 = arith.constant 0 : i32
    %c0_i32_0 = arith.constant 0 : i32
    %c0_i32_1 = arith.constant 0 : i32
    %c0_i32_2 = arith.constant 0 : i32
    return %c0_i32, %c0_i32_0, %c0_i32_1 : i32, i32, i32
  }
  func.func @transform_5(%arg0: i32) -> (i32, i32) {
    %c0_i32 = arith.constant 0 : i32
    %c0_i32_0 = arith.constant 0 : i32
    %c0_i32_1 = arith.constant 0 : i32
    return %c0_i32, %c0_i32_0 : i32, i32
  }
  func.func @transform_6(%arg0: i32) -> (i32, i32) {
    %c0_i32 = arith.constant 0 : i32
    %c0_i32_0 = arith.constant 0 : i32
    %c0_i32_1 = arith.constant 0 : i32
    return %c0_i32, %c0_i32_0 : i32, i32
  }
  func.func @transform_7(%arg0: i32) -> (i32, i32) {
    %c0_i32 = arith.constant 0 : i32
    %c0_i32_0 = arith.constant 0 : i32
    return %arg0, %c0_i32 : i32, i32
  }
}

</mosaic_0001>

<llo_original>
// kernel: _forward.1
$region0: #{_forward.1}
  #allocation0 [shape = 'u32[]', space=smem, size = 0x4, offset = 0x4, fixed_abs, tag = 'smem constant byte address 0x4 - core index']
  #allocation1 [shape = 'u32[72,128]{1,0:T(1,128)}', space=vmem, size = 0x9000, scoped, tag = 'internal scratch']
  #allocation2 [shape = 'f32[1,1]{1,0:T(1,128)S(1)}', space=vmem, size = 0x200, scoped, tag = 'scoped memory for _forward.1']
  %s0 = inlined_call_operand.hbm [shape: f32[8,10], index: 0, kind: input, shape index: {}]
  %s1 = inlined_call_operand.hbm [shape: bf16[10,128], index: 1, kind: input, shape index: {}]
  %s2 = inlined_call_operand.vmem [shape: f32[1,128], index: 2, kind: input, shape index: {}]
  %s3 = inlined_call_operand.hbm [shape: bf16[2,128,128], index: 3, kind: input, shape index: {}]
  %s4 = inlined_call_operand.vmem [shape: f32[2,1,128], index: 4, kind: input, shape index: {}]
  %s5 = inlined_call_operand.vmem [shape: f32[1,128], index: 5, kind: input, shape index: {}]
  %s6 = inlined_call_operand.<no memory space> [shape: f32[1,1], index: 6, kind: input, shape index: {}]
  %s7 = inlined_call_operand.vmem [shape: f32[8,1], index: 7, kind: output, shape index: {}]
  %s8 = sld [smem:[#allocation0]]
  $region50: #{_forward.1} parent=0
    _
  %s10 = ssub.s32 1, %s8
  %s11 = scalar_select 0, %s10, %s8
  %v12 = vstv %s6
  %13 = vst [vmem:[#allocation2] sm:$0x1] %v12
  $region1: #{_forward.1} parent=0
    #allocation3 [shape = 'u8[4096]{0}', space=vmem, size = 0x1000, scoped, tag = 'input window, operand 0, single buffered']
    #allocation4 [shape = 's32[1]{0}', space=sflag, size = 0x4, scoped, tag = 'scoped memory for _forward.1']
    #allocation5 [shape = 'u8[4096]{0}', space=vmem, size = 0x1000, scoped, tag = 'input window, operand 1, single buffered']
    #allocation6 [shape = 's32[1]{0}', space=sflag, size = 0x4, scoped, tag = 'scoped memory for _forward.1']
    #allocation7 [shape = 'u8[65536]{0}', space=vmem, size = 0x10000, scoped, tag = 'input window, operand 3, single buffered']
    %14 = vsyncpa [#allocation4], 0
    %15 = vsyncpa [#allocation6], 0
    // Predicated region
    $region2: #{_forward.1} parent=1 // pred_check
      _
    $region3: #{_forward.1} parent=1 // pred_check_branch
      %17 = sbr.rel (0) target = $region5
    $region4: #{_forward.1} parent=1 // pred_region
      %19 = vsyncadd [#allocation4], 0
      %s21 = sshll.u32 %s0, 4
      %s22 = int_to_ptr.hbm [resolvable:$true] %s21
      %s23 = sshll.u32 [#allocation3], 4
      %s24 = int_to_ptr.vmem [resolvable:$true] %s23
      %26 = dma.hbm_to_vmem [thread:$0]  %s22, 128, %s24, [#allocation4]
    $region5: #{_forward.1} parent=1 // pred_fallthru
      _
    // Predicated region
    $region6: #{_forward.1} parent=1 // pred_check
      _
    $region7: #{_forward.1} parent=1 // pred_check_branch
      %28 = sbr.rel (0) target = $region9
    $region8: #{_forward.1} parent=1 // pred_region
      %30 = vsyncadd [#allocation6], 0
      %s31 = sshll.u32 %s1, 4
      %s32 = int_to_ptr.hbm [resolvable:$true] %s31
      %s33 = sshll.u32 [#allocation5], 4
      %s34 = int_to_ptr.vmem [resolvable:$true] %s33
      %39 = dma.hbm_to_vmem [thread:$0]  %s32, 128, %s34, [#allocation6], 64, 64, 4
    $region9: #{_forward.1} parent=1 // pred_fallthru
      _
    // Predicated region
    $region10: #{_forward.1} parent=1 // pred_check
      _
    $region11: #{_forward.1} parent=1 // pred_check_branch
      %41 = sbr.rel (0) target = $region13
    $region12: #{_forward.1} parent=1 // pred_region
      _
    $region13: #{_forward.1} parent=1 // pred_fallthru
      _
    // Predicated region
    $region14: #{_forward.1} parent=1 // pred_check
      _
    $region15: #{_forward.1} parent=1 // pred_check_branch
      %43 = sbr.rel (0) target = $region17
    $region16: #{_forward.1} parent=1 // pred_region
      %45 = vsyncadd [#allocation6], 0
      %s46 = sshll.u32 %s3, 4
      %s47 = int_to_ptr.hbm [resolvable:$true] %s46
      %s48 = sshll.u32 [#allocation7], 4
      %s49 = int_to_ptr.vmem [resolvable:$true] %s48
      %54 = dma.hbm_to_vmem [thread:$0]  %s47, 2048, %s49, [#allocation6], 64, 64, 4
    $region17: #{_forward.1} parent=1 // pred_fallthru
      _
    // Predicated region
    $region18: #{_forward.1} parent=1 // pred_check
      _
    $region19: #{_forward.1} parent=1 // pred_check_branch
      %56 = sbr.rel (0) target = $region21
    $region20: #{_forward.1} parent=1 // pred_region
      _
    $region21: #{_forward.1} parent=1 // pred_fallthru
      _
    // Predicated region
    $region22: #{_forward.1} parent=1 // pred_check
      _
    $region23: #{_forward.1} parent=1 // pred_check_branch
      %58 = sbr.rel (0) target = $region25
    $region24: #{_forward.1} parent=1 // pred_region
      _
    $region25: #{_forward.1} parent=1 // pred_fallthru
      _
    // Predicated region
    $region26: #{_forward.1} parent=1 // pred_check
      _
    $region27: #{_forward.1} parent=1 // pred_check_branch
      %60 = sbr.rel (0) target = $region29
    $region28: #{_forward.1} parent=1 // pred_region
      _
    $region29: #{_forward.1} parent=1 // pred_fallthru
      _
    // Predicated region
    $region30: #{_forward.1} parent=1 // pred_check
      _
    $region31: #{_forward.1} parent=1 // pred_check_branch
      %62 = sbr.rel (0) target = $region33
    $region32: #{_forward.1} parent=1 // pred_region
      %64 = dma.done [#allocation4], 128
    $region33: #{_forward.1} parent=1 // pred_fallthru
      _
    // Predicated region
    $region34: #{_forward.1} parent=1 // pred_check
      _
    $region35: #{_forward.1} parent=1 // pred_check_branch
      %66 = sbr.rel (0) target = $region37
    $region36: #{_forward.1} parent=1 // pred_region
      %68 = dma.done [#allocation6], 128
    $region37: #{_forward.1} parent=1 // pred_fallthru
      _
    // Predicated region
    $region38: #{_forward.1} parent=1 // pred_check
      _
    $region39: #{_forward.1} parent=1 // pred_check_branch
      %70 = sbr.rel (0) target = $region41
    $region40: #{_forward.1} parent=1 // pred_region
      %72 = dma.done [#allocation6], 2048
    $region41: #{_forward.1} parent=1 // pred_fallthru
      _
    %v74 = vld [vmem:[#allocation3] sm:$0xff]
    %v75 = vpack.c.bf16 %v74, %v74
    %v76 = vld [vmem:[#allocation5] sm:$0xf]
    %v77 = vld [vmem:[#allocation5 + $0x4] sm:$0x1]
    %v78 = vld [vmem:[%s2] sm:$0x1]
    %v80 = vperm.slane %v78, 0
    %v84 = vunpack.c.l.b16 %v76
    %v85 = vunpack.c.l.b16 %v77
    %v86 = vpack.c.b16 %v85, %v84
    %vm87 = vcmask 80896
    %v89 = vsel %vm87, %v75, 0
    %vm91 = vcmask 1044480
    %v93 = vsel %vm91, %v86, 0
    %95 = vmatpush.bf16.msra.mxu0 0
    %96 = vmatpush.bf16.msra.mxu0 0
    %97 = vmatpush.bf16.msra.mxu0 0
    %98 = vmatpush.bf16.msra.mxu0 0
    %99 = vmatpush.bf16.msra.mxu0 0
    %100 = vmatpush.bf16.msra.mxu0 0
    %101 = vmatpush.bf16.msra.mxu0 0
    %102 = vmatpush.bf16.msra.mxu0 %v93
    %103 = vmatmul.bf16.gmra.mxu0 %v89
    %v104 = vpop.f32.mrf.mxu0
    %v105 = vadd.f32 %v80, %v104
    %v106 = vpop.f32.mrf.mxu0
    %107 = vdwg.mxu0
    %v108 = vtanh.pop %v105
    %v109 = vpack.c.bf16 %v108, %v108
    %v110 = vld [vmem:[#allocation7] sm:$0xf]
    %v111 = vld [vmem:[#allocation7 + $0x4] sm:$0xf]
    %v112 = vld [vmem:[#allocation7 + $0x8] sm:$0xf]
    %v113 = vld [vmem:[#allocation7 + $0xc] sm:$0xf]
    %v114 = vld [vmem:[#allocation7 + $0x10] sm:$0xf]
    %v115 = vld [vmem:[#allocation7 + $0x14] sm:$0xf]
    %v116 = vld [vmem:[#allocation7 + $0x18] sm:$0xf]
    %v117 = vld [vmem:[#allocation7 + $0x1c] sm:$0xf]
    %v118 = vld [vmem:[#allocation7 + $0x20] sm:$0xf]
    %v119 = vld [vmem:[#allocation7 + $0x24] sm:$0xf]
    %v120 = vld [vmem:[#allocation7 + $0x28] sm:$0xf]
    %v121 = vld [vmem:[#allocation7 + $0x2c] sm:$0xf]
    %v122 = vld [vmem:[#allocation7 + $0x30] sm:$0xf]
    %v123 = vld [vmem:[#allocation7 + $0x34] sm:$0xf]
    %v124 = vld [vmem:[#allocation7 + $0x38] sm:$0xf]
    %v125 = vld [vmem:[#allocation7 + $0x3c] sm:$0xf]
    %v126 = vld [vmem:[%s4] sm:$0x1]
    %v128 = vperm.slane %v126, 0
    %v146 = vunpack.c.l.b16 %v110
    %v147 = vunpack.c.l.b16 %v111
    %v148 = vunpack.c.l.b16 %v112
    %v149 = vunpack.c.l.b16 %v113
    %v150 = vunpack.c.l.b16 %v114
    %v151 = vunpack.c.l.b16 %v115
    %v152 = vunpack.c.l.b16 %v116
    %v153 = vunpack.c.l.b16 %v117
    %v154 = vunpack.c.l.b16 %v118
    %v155 = vunpack.c.l.b16 %v119
    %v156 = vunpack.c.l.b16 %v120
    %v157 = vunpack.c.l.b16 %v121
    %v158 = vunpack.c.l.b16 %v122
    %v159 = vunpack.c.l.b16 %v123
    %v160 = vunpack.c.l.b16 %v124
    %v161 = vunpack.c.l.b16 %v125
    %v162 = vpack.c.b16 %v147, %v146
    %v163 = vpack.c.b16 %v149, %v148
    %v164 = vpack.c.b16 %v151, %v150
    %v165 = vpack.c.b16 %v153, %v152
    %v166 = vpack.c.b16 %v155, %v154
    %v167 = vpack.c.b16 %v157, %v156
    %v168 = vpack.c.b16 %v159, %v158
    %v169 = vpack.c.b16 %v161, %v160
    %178 = vmatpush.bf16.msra.mxu0 %v169
    %179 = vmatpush.bf16.msra.mxu0 %v168
    %180 = vmatpush.bf16.msra.mxu0 %v167
    %181 = vmatpush.bf16.msra.mxu0 %v166
    %182 = vmatpush.bf16.msra.mxu0 %v165
    %183 = vmatpush.bf16.msra.mxu0 %v164
    %184 = vmatpush.bf16.msra.mxu0 %v163
    %185 = vmatpush.bf16.msra.mxu0 %v162
    %186 = vmatmul.bf16.gmra.mxu0 %v109
    %v187 = vpop.f32.mrf.mxu0
    %v188 = vadd.f32 %v128, %v187
    %v189 = vpop.f32.mrf.mxu0
    %190 = vdwg.mxu0
    %v191 = vtanh.pop %v188
    %v192 = vpack.c.bf16 %v191, %v191
    %s193 = scalar_lea.vmem [#allocation7], 64
    %v194 = vld [vmem:[%s193] sm:$0xf]
    %v195 = vld [vmem:[%s193 + $0x4] sm:$0xf]
    %v196 = vld [vmem:[%s193 + $0x8] sm:$0xf]
    %v197 = vld [vmem:[%s193 + $0xc] sm:$0xf]
    %v198 = vld [vmem:[%s193 + $0x10] sm:$0xf]
    %v199 = vld [vmem:[%s193 + $0x14] sm:$0xf]
    %v200 = vld [vmem:[%s193 + $0x18] sm:$0xf]
    %v201 = vld [vmem:[%s193 + $0x1c] sm:$0xf]
    %v202 = vld [vmem:[%s193 + $0x20] sm:$0xf]
    %v203 = vld [vmem:[%s193 + $0x24] sm:$0xf]
    %v204 = vld [vmem:[%s193 + $0x28] sm:$0xf]
    %v205 = vld [vmem:[%s193 + $0x2c] sm:$0xf]
    %v206 = vld [vmem:[%s193 + $0x30] sm:$0xf]
    %v207 = vld [vmem:[%s193 + $0x34] sm:$0xf]
    %v208 = vld [vmem:[%s193 + $0x38] sm:$0xf]
    %v209 = vld [vmem:[%s193 + $0x3c] sm:$0xf]
    %s210 = scalar_lea.vmem %s4, 1
    %v211 = vld [vmem:[%s210] sm:$0x1]
    %v213 = vperm.slane %v211, 0
    %v231 = vunpack.c.l.b16 %v194
    %v232 = vunpack.c.l.b16 %v195
    %v233 = vunpack.c.l.b16 %v196
    %v234 = vunpack.c.l.b16 %v197
    %v235 = vunpack.c.l.b16 %v198
    %v236 = vunpack.c.l.b16 %v199
    %v237 = vunpack.c.l.b16 %v200
    %v238 = vunpack.c.l.b16 %v201
    %v239 = vunpack.c.l.b16 %v202
    %v240 = vunpack.c.l.b16 %v203
    %v241 = vunpack.c.l.b16 %v204
    %v242 = vunpack.c.l.b16 %v205
    %v243 = vunpack.c.l.b16 %v206
    %v244 = vunpack.c.l.b16 %v207
    %v245 = vunpack.c.l.b16 %v208
    %v246 = vunpack.c.l.b16 %v209
    %v247 = vpack.c.b16 %v232, %v231
    %v248 = vpack.c.b16 %v234, %v233
    %v249 = vpack.c.b16 %v236, %v235
    %v250 = vpack.c.b16 %v238, %v237
    %v251 = vpack.c.b16 %v240, %v239
    %v252 = vpack.c.b16 %v242, %v241
    %v253 = vpack.c.b16 %v244, %v243
    %v254 = vpack.c.b16 %v246, %v245
    %263 = vmatpush.bf16.msra.mxu0 %v254
    %264 = vmatpush.bf16.msra.mxu0 %v253
    %265 = vmatpush.bf16.msra.mxu0 %v252
    %266 = vmatpush.bf16.msra.mxu0 %v251
    %267 = vmatpush.bf16.msra.mxu0 %v250
    %268 = vmatpush.bf16.msra.mxu0 %v249
    %269 = vmatpush.bf16.msra.mxu0 %v248
    %270 = vmatpush.bf16.msra.mxu0 %v247
    %271 = vmatmul.bf16.gmra.mxu0 %v192
    %v272 = vpop.f32.mrf.mxu0
    %v273 = vadd.f32 %v213, %v272
    %v274 = vpop.f32.mrf.mxu0
    %275 = vdwg.mxu0
    %v276 = vtanh.pop %v273
    %v277 = vld [vmem:[%s5] sm:$0x1]
    %v279 = vperm.slane %v277, 0
    %v281 = vmul.f32 %v276, %v279
    %282 = vadd.xlane.f32.xlu0 %v281
    %v283 = vpop.xlane.xlu0 %282
    %v284 = vld [vmem:[#allocation2] sm:$0x1]
    %v286 = vperm.slane %v284, 0
    %v288 = vadd.f32 %v283, %v286
    %vm289 = vcmask 7168
    %290 = vst.msk [vmem:[%s7] sm:$0xff] %vm289, %v288
    // Predicated region
    $region42: #{_forward.1} parent=1 // pred_check
      _
    $region43: #{_forward.1} parent=1 // pred_check_branch
      %292 = sbr.rel (0) target = $region45
    $region44: #{_forward.1} parent=1 // pred_region
      _
    $region45: #{_forward.1} parent=1 // pred_fallthru
      _
    // Predicated region
    $region46: #{_forward.1} parent=1 // pred_check
      _
    $region47: #{_forward.1} parent=1 // pred_check_branch
      %294 = sbr.rel (0) target = $region49
    $region48: #{_forward.1} parent=1 // pred_region
      _
    $region49: #{_forward.1} parent=1 // pred_fallthru
      _
    %295 = vsyncpa [#allocation4], 1
    %296 = vsyncpa [#allocation6], 1

</llo_original>
